<compile_context>
chip_gen: v5e
topology: v5e:2x2
jax: 0.10.0
libtpu: 0.0.40
codegen_flags: <defaults>
</compile_context>

<pallas_src>
import functools
import math

import jax
import jax.numpy as jnp
from jax.experimental import pallas as pl
from jax.experimental.pallas import tpu as pltpu


# Raised above the default scoped VMEM limit (16 MiB v5e / 32 MiB v6e, v7x)
# but kept under v7x's 64 MiB physical VMEM.
_VMEM_LIMIT_BYTES = 48 * 1024 * 1024


def _pick_tile(n, candidates):
    """Largest candidate dividing n, else the full extent (always legal).

    A full-extent fallback gives a single, un-pipelined grid step; callers
    with awkward sizes should pad to a multiple of 128 upstream.
    """
    for c in candidates:
        if n % c == 0:
            return c
    return n


def _resident_spec(block_shape, index_map):
    """BlockSpec for a block whose index is constant along the inner grid axis.

    Single-buffered (pl.Buffered(1)): double-buffering a block that is never
    re-fetched only burns VMEM.  Falls back to a plain spec on JAX versions
    without pipeline_mode support.
    """
    try:
        return pl.BlockSpec(block_shape, index_map, pipeline_mode=pl.Buffered(1))
    except (AttributeError, TypeError):
        return pl.BlockSpec(block_shape, index_map)


# ---------------------------------------------------------------------------
# Stage 1: fused QKV projection   (B*S, D) @ (D, 3D) -> 3 x (B*S, D)
# ---------------------------------------------------------------------------
def _qkv_proj_kernel(x_ref, w_ref, q_ref, k_ref, v_ref, *, d):
    # One wide MXU matmul (weights pre-transposed to (in, 3*out); the
    # 1/sqrt(d_k) scale is folded into the W_q columns), f32 accumulation.
    res = jnp.dot(x_ref[...], w_ref[...], preferred_element_type=jnp.float32)
    # Per-output column writes -> three separate (rows, D) arrays, so the
    # attention stage never needs wrapper-side slices of a packed QKV tensor.
    q_ref[...] = res[:, :d].astype(q_ref.dtype)
    k_ref[...] = res[:, d:2 * d].astype(k_ref.dtype)
    v_ref[...] = res[:, 2 * d:].astype(v_ref.dtype)


def _qkv_projection(x2d, w_qkv, *, vmem_limit_bytes):
    rows, d = x2d.shape
    d3 = w_qkv.shape[1]
    tm = _pick_tile(rows, (1024, 512, 256, 128, 64, 32, 16, 8))
    out_sds = jax.ShapeDtypeStruct((rows, d), x2d.dtype)
    row_spec = lambda i: (i, 0)
    return pl.pallas_call(
        functools.partial(_qkv_proj_kernel, d=d),
        out_shape=(out_sds, out_sds, out_sds),
        grid_spec=pltpu.PrefetchScalarGridSpec(
            num_scalar_prefetch=0,
            grid=(rows // tm,),
            in_specs=[
                pl.BlockSpec((tm, d), row_spec),
                _resident_spec((d, d3), lambda i: (0, 0)),  # weights stay resident
            ],
            out_specs=[
                pl.BlockSpec((tm, d), row_spec),
                pl.BlockSpec((tm, d), row_spec),
                pl.BlockSpec((tm, d), row_spec),
            ],
        ),
        compiler_params=pltpu.CompilerParams(
            dimension_semantics=("parallel",),
            vmem_limit_bytes=vmem_limit_bytes,
        ),
    )(x2d, w_qkv)


# ---------------------------------------------------------------------------
# Stage 2: scaled dot-product attention, tiled over the query axis.
# ---------------------------------------------------------------------------
def _attn_kernel(q_ref, k_ref, v_ref, out_ref, probs_ref, kt_ref):
    # K's block index is constant across the query-tile axis: build K^T once
    # per batch (via f32 for the most portable transpose lowering), so the
    # scores matmul below is a plain (tq, D) @ (D, S) with no per-step
    # transpose landing on the XLU.
    @pl.when(pl.program_id(1) == 0)
    def _():
        kt_ref[...] = k_ref[0].astype(jnp.float32).T.astype(kt_ref.dtype)

    q = q_ref[0]                       # (tq, D), pre-scaled by 1/sqrt(d_k)
    scores = jnp.dot(q, kt_ref[...], preferred_element_type=jnp.float32)  # (tq, S)

    # Numerically-stable softmax along the key axis.  Reciprocal goes to the
    # EUP (approx) + one Newton step (f32-exact), keeping the VALU free.
    m = jnp.max(scores, axis=-1, keepdims=True)
    e = jnp.exp(scores - m)
    denom = jnp.sum(e, axis=-1, keepdims=True)
    r = pl.reciprocal(denom, approx=True)
    r = r * (2.0 - denom * r)
    probs = e * r                      # (tq, S), f32

    v = v_ref[0]                       # (S, D)
    out = jnp.dot(probs.astype(v.dtype), v, preferred_element_type=jnp.float32)

    out_ref[0] = out.astype(out_ref.dtype)
    probs_ref[0] = probs.astype(probs_ref.dtype)


def self_attention(x, w_q, w_k, w_v, *, compute_dtype=jnp.bfloat16,
                   out_dtype=None, probs_dtype=None, tq=None,
                   vmem_limit_bytes=_VMEM_LIMIT_BYTES):
    """Single-head self-attention matching the PyTorch module.

    x:   (B, S, D) activations.
    w_*: (D, D) weights in PyTorch nn.Linear (out, in) layout, no bias.

    Returns (output (B, S, D) in `out_dtype` [default: x.dtype],
             attention_probs (B, S, S) in `probs_dtype` [default: compute_dtype]).

    compute_dtype defaults to bfloat16 (bf16 MXU operands, f32 accumulation).
    Pass compute_dtype=probs_dtype=jnp.float32 for a full-precision path.
    Note: with bf16 probs, rows sum to 1 only within bf16 rounding.
    """
    B, S, D = x.shape
    compute_dtype = jnp.dtype(compute_dtype)
    out_dtype = jnp.dtype(out_dtype) if out_dtype is not None else x.dtype
    probs_dtype = jnp.dtype(probs_dtype) if probs_dtype is not None else compute_dtype

    # Pre-transpose to (in, out), fuse into one (D, 3D) weight and fold the
    # 1/sqrt(d_k) score scale into the W_q columns (applied once to a DxD
    # weight instead of to every (tq, S) score tile).
    inv_sqrt_dk = 1.0 / math.sqrt(float(D))
    w_qkv = jnp.concatenate(
        [w_q.T * inv_sqrt_dk, w_k.T, w_v.T], axis=1
    ).astype(compute_dtype)

    x2d = x.reshape(B * S, D).astype(compute_dtype)
    q2d, k2d, v2d = _qkv_projection(x2d, w_qkv, vmem_limit_bytes=vmem_limit_bytes)
    q = q2d.reshape(B, S, D)   # free reshapes; no slicing copies between stages
    k = k2d.reshape(B, S, D)
    v = v2d.reshape(B, S, D)

    if tq is None:
        # v6e/v7x: 256 matches the 2x256 MXU; on v5e prefer tq=128 (128x128
        # MXU, single vector-store slot) by passing tq=128 explicitly.
        tq = _pick_tile(S, (256, 128, 64, 32, 16, 8))

    out, probs = pl.pallas_call(
        _attn_kernel,
        out_shape=(
            jax.ShapeDtypeStruct((B, S, D), out_dtype),
            jax.ShapeDtypeStruct((B, S, S), probs_dtype),
        ),
        grid_spec=pltpu.PrefetchScalarGridSpec(
            num_scalar_prefetch=0,
            grid=(B, S // tq),
            in_specs=[
                pl.BlockSpec((1, tq, D), lambda b, i: (b, i, 0)),   # Q tile
                _resident_spec((1, S, D), lambda b, i: (b, 0, 0)),  # K (full seq / batch)
                _resident_spec((1, S, D), lambda b, i: (b, 0, 0)),  # V (full seq / batch)
            ],
            out_specs=[
                pl.BlockSpec((1, tq, D), lambda b, i: (b, i, 0)),   # output
                pl.BlockSpec((1, tq, S), lambda b, i: (b, i, 0)),   # attention probs
            ],
            # Hoisted K^T, persists across the inner (query-tile) axis.
            scratch_shapes=[pltpu.VMEM((D, S), compute_dtype)],
        ),
        compiler_params=pltpu.CompilerParams(
            # Batch axis carries the v7x megacore parallelism (each core keeps
            # its own resident K/V + K^T scratch); the query axis must stay
            # sequential because of the pl.when(i == 0) K^T hoist.
            dimension_semantics=("parallel", "arbitrary"),
            vmem_limit_bytes=vmem_limit_bytes,
        ),
    )(q, k, v)
    # NOTE: for very long sequences (2*S*D*compute_bytes + tq*S*4 approaching
    # the VMEM budget, e.g. S >= 2-4K with D >= 512 on v7x) switch the kernel
    # body to flash-style key tiling (online softmax over S//tk chunks) so
    # VMEM becomes independent of S.
    return out, probs


def _reference(x, w_q, w_k, w_v):
    d_k = x.shape[-1]
    q = x @ w_q.T
    k = x @ w_k.T
    v = x @ w_v.T
    scores = jnp.einsum("bqd,bkd->bqk", q, k) / jnp.sqrt(jnp.float32(d_k))
    probs = jax.nn.softmax(scores, axis=-1)
    out = jnp.einsum("bqk,bkd->bqd", probs, v)
    return out, probs


if __name__ == "__main__":
    B, S, D = 2, 8, 32  # batch, seq, d_model

    key = jax.random.PRNGKey(0)
    kx, kq, kk, kv = jax.random.split(key, 4)

    x = jax.random.normal(kx, (B, S, D), dtype=jnp.float32)
    # Deterministic init mimicking nn.Linear's uniform(-1/sqrt(in), 1/sqrt(in))
    bound = 1.0 / math.sqrt(D)
    w_q = jax.random.uniform(kq, (D, D), jnp.float32, -bound, bound)
    w_k = jax.random.uniform(kk, (D, D), jnp.float32, -bound, bound)
    w_v = jax.random.uniform(kv, (D, D), jnp.float32, -bound, bound)

    ref_out, ref_probs = _reference(x, w_q, w_k, w_v)

    # --- full-precision verification path (tight check) ---
    out, probs = self_attention(
        x, w_q, w_k, w_v, compute_dtype=jnp.float32, probs_dtype=jnp.float32
    )
    out = jax.block_until_ready(out)
    probs = jax.block_until_ready(probs)
    assert out.shape == (B, S, D) and probs.shape == (B, S, S)
    assert out.dtype == jnp.float32 and probs.dtype == jnp.float32
    assert jnp.allclose(out, ref_out, atol=5e-5, rtol=5e-5)
    assert jnp.allclose(probs, ref_probs, atol=5e-5, rtol=5e-5)

    # --- default bf16 MXU fast path (looser check: bf16 operands + bf16 probs) ---
    out_bf, probs_bf = self_attention(x, w_q, w_k, w_v)
    out_bf = jax.block_until_ready(out_bf)
    probs_bf = jax.block_until_ready(probs_bf)
    assert out_bf.shape == (B, S, D) and probs_bf.shape == (B, S, S)
    assert probs_bf.dtype == jnp.bfloat16
    assert jnp.allclose(out_bf.astype(jnp.float32), ref_out, atol=3e-2, rtol=3e-2)
    assert jnp.allclose(probs_bf.astype(jnp.float32), ref_probs, atol=3e-2, rtol=3e-2)

    print("KERNEL_OK")
</pallas_src>

<mosaic_0001>
module attributes {stable_mosaic.version = 11 : i64} {
  func.func @_qkv_proj_kernel(%arg0: i32, %arg1: memref<16x32xf32, #tpu.memory_space<vmem>>, %arg2: memref<32x96xf32, #tpu.memory_space<vmem>>, %arg3: memref<16x32xf32, #tpu.memory_space<vmem>>, %arg4: memref<16x32xf32, #tpu.memory_space<vmem>>, %arg5: memref<16x32xf32, #tpu.memory_space<vmem>>) attributes {dimension_semantics = [#tpu.dimension_semantics<parallel>], iteration_bounds = array<i64: 1>, scalar_prefetch = 0 : i64, scratch_operands = 0 : i64, tpu.core_type = #tpu.core_type<tc>, window_params = [{transform_indices = @transform_0, window_bounds = array<i64: 16, 32>}, {pipeline_mode = #tpu.pipeline_mode<synchronous>, transform_indices = @transform_1, window_bounds = array<i64: 32, 96>}, {transform_indices = @transform_2, window_bounds = array<i64: 16, 32>}, {transform_indices = @transform_3, window_bounds = array<i64: 16, 32>}, {transform_indices = @transform_4, window_bounds = array<i64: 16, 32>}]} {
    %c0 = arith.constant 0 : index
    %c0_0 = arith.constant 0 : index
    %0 = vector.load %arg1[%c0, %c0_0] : memref<16x32xf32, #tpu.memory_space<vmem>>, vector<16x32xf32>
    %c0_1 = arith.constant 0 : index
    %c0_2 = arith.constant 0 : index
    %1 = vector.load %arg2[%c0_1, %c0_2] : memref<32x96xf32, #tpu.memory_space<vmem>>, vector<32x96xf32>
    %cst = arith.constant dense<0.000000e+00> : vector<16x96xf32>
    %2 = tpu.matmul %0, %1, %cst {dimension_numbers = #tpu.dot_dimension_numbers<[1], [0], [0], [1], [0, 0, 1, 1], [], []>} : vector<16x32xf32>, vector<32x96xf32>, vector<16x96xf32> -> vector<16x96xf32>
    %3 = vector.extract_strided_slice %2 {offsets = [0, 0], sizes = [16, 32], strides = [1, 1]} : vector<16x96xf32> to vector<16x32xf32>
    %c0_3 = arith.constant 0 : index
    %c0_4 = arith.constant 0 : index
    %4 = vector.load %arg3[%c0_3, %c0_4] : memref<16x32xf32, #tpu.memory_space<vmem>>, vector<16x32xf32>
    tpu.vector_store %arg3[%c0_3, %c0_4], %3 {strides = array<i32>} : memref<16x32xf32, #tpu.memory_space<vmem>>, vector<16x32xf32>,
    %5 = vector.extract_strided_slice %2 {offsets = [0, 32], sizes = [16, 32], strides = [1, 1]} : vector<16x96xf32> to vector<16x32xf32>
    %c0_5 = arith.constant 0 : index
    %c0_6 = arith.constant 0 : index
    %6 = vector.load %arg4[%c0_5, %c0_6] : memref<16x32xf32, #tpu.memory_space<vmem>>, vector<16x32xf32>
    tpu.vector_store %arg4[%c0_5, %c0_6], %5 {strides = array<i32>} : memref<16x32xf32, #tpu.memory_space<vmem>>, vector<16x32xf32>,
    %7 = vector.extract_strided_slice %2 {offsets = [0, 64], sizes = [16, 32], strides = [1, 1]} : vector<16x96xf32> to vector<16x32xf32>
    %c0_7 = arith.constant 0 : index
    %c0_8 = arith.constant 0 : index
    %8 = vector.load %arg5[%c0_7, %c0_8] : memref<16x32xf32, #tpu.memory_space<vmem>>, vector<16x32xf32>
    tpu.vector_store %arg5[%c0_7, %c0_8], %7 {strides = array<i32>} : memref<16x32xf32, #tpu.memory_space<vmem>>, vector<16x32xf32>,
    return
  }
  func.func @transform_0(%arg0: i32) -> (i32, i32) {
    %c0_i32 = arith.constant 0 : i32
    %c0_i32_0 = arith.constant 0 : i32
    return %arg0, %c0_i32 : i32, i32
  }
  func.func @transform_1(%arg0: i32) -> (i32, i32) {
    %c0_i32 = arith.constant 0 : i32
    %c0_i32_0 = arith.constant 0 : i32
    %c0_i32_1 = arith.constant 0 : i32
    return %c0_i32, %c0_i32_0 : i32, i32
  }
  func.func @transform_2(%arg0: i32) -> (i32, i32) {
    %c0_i32 = arith.constant 0 : i32
    %c0_i32_0 = arith.constant 0 : i32
    return %arg0, %c0_i32 : i32, i32
  }
  func.func @transform_3(%arg0: i32) -> (i32, i32) {
    %c0_i32 = arith.constant 0 : i32
    %c0_i32_0 = arith.constant 0 : i32
    return %arg0, %c0_i32 : i32, i32
  }
  func.func @transform_4(%arg0: i32) -> (i32, i32) {
    %c0_i32 = arith.constant 0 : i32
    %c0_i32_0 = arith.constant 0 : i32
    return %arg0, %c0_i32 : i32, i32
  }
}

</mosaic_0001>

<llo_original>
// kernel: tpu_custom_call.1
$region0: #{tpu_custom_call.1}
  #allocation0 [shape = 'u32[]', space=smem, size = 0x4, offset = 0x4, fixed_abs, tag = 'smem constant byte address 0x4 - core index']
  #allocation1 [shape = 'u32[72,128]{1,0:T(1,128)}', space=vmem, size = 0x9000, scoped, tag = 'internal scratch']
  %s0 = inlined_call_operand.hbm [shape: f32[16,32], index: 0, kind: input, shape index: {}]
  %s1 = inlined_call_operand.hbm [shape: f32[32,96], index: 1, kind: input, shape index: {}]
  %s2 = inlined_call_operand.hbm [shape: f32[16,32], index: 2, kind: output, shape index: {0}]
  %s3 = inlined_call_operand.hbm [shape: f32[16,32], index: 3, kind: output, shape index: {1}]
  %s4 = inlined_call_operand.hbm [shape: f32[16,32], index: 4, kind: output, shape index: {2}]
  %5 = xla_tuple %s2, %s3, %s4
  %s6 = sld [smem:[#allocation0]]
  $region42: #{tpu_custom_call.1} parent=0
    _
  %s8 = ssub.s32 1, %s6
  %s9 = scalar_select 0, %s8, %s6
  $region1: #{tpu_custom_call.1} parent=0
    #allocation2 [shape = 'u8[8192]{0}', space=vmem, size = 0x2000, scoped, tag = 'input window, operand 0, single buffered']
    #allocation3 [shape = 's32[1]{0}', space=sflag, size = 0x4, scoped, tag = 'scoped memory for tpu_custom_call.1']
    #allocation4 [shape = 's32[1]{0}', space=sflag, size = 0x4, scoped, tag = 'scoped memory for tpu_custom_call.1']
    #allocation5 [shape = 'u8[16384]{0}', space=vmem, size = 0x4000, scoped, tag = 'input window, operand 1, single buffered']
    #allocation6 [shape = 's32[1]{0}', space=sflag, size = 0x4, scoped, tag = 'scoped memory for tpu_custom_call.1']
    #allocation7 [shape = 'u8[8192]{0}', space=vmem, size = 0x2000, scoped, tag = 'output window, operand 0, single buffered']
    #allocation8 [shape = 'u8[8192]{0}', space=vmem, size = 0x2000, scoped, tag = 'output window, operand 1, single buffered']
    #allocation9 [shape = 's32[1]{0}', space=sflag, size = 0x4, scoped, tag = 'scoped memory for tpu_custom_call.1']
    #allocation10 [shape = 'u8[8192]{0}', space=vmem, size = 0x2000, scoped, tag = 'output window, operand 2, single buffered']
    %10 = vsyncpa [#allocation3], 0
    %11 = vsyncpa [#allocation6], 0
    %12 = vsyncpa [#allocation4], 0
    %13 = vsyncpa [#allocation9], 0
    // Predicated region
    $region2: #{tpu_custom_call.1} parent=1 // pred_check
      _
    $region3: #{tpu_custom_call.1} parent=1 // pred_check_branch
      %15 = sbr.rel (0) target = $region5
    $region4: #{tpu_custom_call.1} parent=1 // pred_region
      %17 = vsyncadd [#allocation3], 0
      %s18 = sshll.u32 %s0, 4
      %s19 = int_to_ptr.hbm [resolvable:$true] %s18
      %s20 = sshll.u32 [#allocation2], 4
      %s21 = int_to_ptr.vmem [resolvable:$true] %s20
      %26 = dma.hbm_to_vmem [thread:$0]  %s19, 256, %s21, [#allocation3], 128, 128, 8
    $region5: #{tpu_custom_call.1} parent=1 // pred_fallthru
      _
    // Predicated region
    $region6: #{tpu_custom_call.1} parent=1 // pred_check
      _
    $region7: #{tpu_custom_call.1} parent=1 // pred_check_branch
      %28 = sbr.rel (0) target = $region9
    $region8: #{tpu_custom_call.1} parent=1 // pred_region
      %30 = vsyncadd [#allocation6], 0
      %s31 = sshll.u32 %s1, 4
      %s32 = int_to_ptr.hbm [resolvable:$true] %s31
      %s33 = sshll.u32 [#allocation5], 4
      %s34 = int_to_ptr.vmem [resolvable:$true] %s33
      %39 = dma.hbm_to_vmem [thread:$0]  %s32, 512, %s34, [#allocation6], 128, 128, 8
    $region9: #{tpu_custom_call.1} parent=1 // pred_fallthru
      _
    // Predicated region
    $region10: #{tpu_custom_call.1} parent=1 // pred_check
      _
    $region11: #{tpu_custom_call.1} parent=1 // pred_check_branch
      %41 = sbr.rel (0) target = $region13
    $region12: #{tpu_custom_call.1} parent=1 // pred_region
      %43 = dma.done [#allocation3], 256
    $region13: #{tpu_custom_call.1} parent=1 // pred_fallthru
      _
    // Predicated region
    $region14: #{tpu_custom_call.1} parent=1 // pred_check
      _
    $region15: #{tpu_custom_call.1} parent=1 // pred_check_branch
      %45 = sbr.rel (0) target = $region17
    $region16: #{tpu_custom_call.1} parent=1 // pred_region
      %47 = dma.done [#allocation6], 512
    $region17: #{tpu_custom_call.1} parent=1 // pred_fallthru
      _
    %v48 = vld [vmem:[#allocation2] sm:$0xff]
    %v49 = vld [vmem:[#allocation2 + $0x8] sm:$0xff]
    %v50 = vld [vmem:[#allocation5] sm:$0xff]
    %v51 = vld [vmem:[#allocation5 + $0x8] sm:$0xff]
    %v52 = vld [vmem:[#allocation5 + $0x10] sm:$0xff]
    %v53 = vld [vmem:[#allocation5 + $0x18] sm:$0xff]
    %vm54 = vcmask 261120
    %v56 = vsel %vm54, %v48, 0
    %v59 = vsel %vm54, %v49, 0
    %61 = vmatpush.msra.mxu0 0.0
    %62 = vmatpush.msra.mxu0 0.0
    %63 = vmatpush.msra.mxu0 0.0
    %64 = vmatpush.msra.mxu0 0.0
    %65 = vmatpush.msra.mxu0 0.0
    %66 = vmatpush.msra.mxu0 0.0
    %67 = vmatpush.msra.mxu0 0.0
    %68 = vmatpush.msra.mxu0 0.0
    %69 = vmatpush.msra.mxu0 0.0
    %70 = vmatpush.msra.mxu0 0.0
    %71 = vmatpush.msra.mxu0 0.0
    %72 = vmatpush.msra.mxu0 0.0
    %73 = vmatpush.msra.mxu0 %v53
    %74 = vmatpush.msra.mxu0 %v52
    %75 = vmatpush.msra.mxu0 %v51
    %76 = vmatpush.msra.mxu0 %v50
    %77 = vmatmul.f32.gmra.mxu0 %v56
    %v78 = vpop.f32.mrf.mxu0
    %v79 = vadd.f32 0.0, %v78
    %80 = vmatmul.f32.gmra.mxu0 %v59
    %v81 = vpop.f32.mrf.mxu0
    %v82 = vadd.f32 0.0, %v81
    %83 = vdwg.mxu0
    %84 = vst.msk [vmem:[#allocation7] sm:$0xff] %vm54, %v79
    %85 = vst.msk [vmem:[#allocation7 + $0x8] sm:$0xff] %vm54, %v82
    %88 = vrot.lane.b32.xlu0 %v79, 96
    %v89 = vpop.permute.xlu0 %88
    %90 = vrot.lane.b32.xlu0 %v82, 96
    %v91 = vpop.permute.xlu0 %90
    %94 = vst.msk [vmem:[#allocation8] sm:$0xff] %vm54, %v89
    %95 = vst.msk [vmem:[#allocation8 + $0x8] sm:$0xff] %vm54, %v91
    %96 = vrot.lane.b32.xlu0 %v79, 64
    %v97 = vpop.permute.xlu0 %96
    %98 = vrot.lane.b32.xlu0 %v82, 64
    %v99 = vpop.permute.xlu0 %98
    %102 = vst.msk [vmem:[#allocation10] sm:$0xff] %vm54, %v97
    %103 = vst.msk [vmem:[#allocation10 + $0x8] sm:$0xff] %vm54, %v99
    // Predicated region
    $region18: #{tpu_custom_call.1} parent=1 // pred_check
      _
    $region19: #{tpu_custom_call.1} parent=1 // pred_check_branch
      %105 = sbr.rel (0) target = $region21
    $region20: #{tpu_custom_call.1} parent=1 // pred_region
      %107 = vsyncadd [#allocation4], 0
      %s108 = sshll.u32 [#allocation7], 4
      %s109 = int_to_ptr.vmem [resolvable:$true] %s108
      %s110 = sshll.u32 %s2, 4
      %s111 = int_to_ptr.hbm [resolvable:$true] %s110
      %116 = dma.vmem_to_hbm [thread:$0]  %s109, 256, %s111, [#allocation4], 128, 128, 8
    $region21: #{tpu_custom_call.1} parent=1 // pred_fallthru
      _
    // Predicated region
    $region22: #{tpu_custom_call.1} parent=1 // pred_check
      _
    $region23: #{tpu_custom_call.1} parent=1 // pred_check_branch
      %118 = sbr.rel (0) target = $region25
    $region24: #{tpu_custom_call.1} parent=1 // pred_region
      %120 = vsyncadd [#allocation9], 0
      %s121 = sshll.u32 [#allocation8], 4
      %s122 = int_to_ptr.vmem [resolvable:$true] %s121
      %s123 = sshll.u32 %s3, 4
      %s124 = int_to_ptr.hbm [resolvable:$true] %s123
      %129 = dma.vmem_to_hbm [thread:$0]  %s122, 256, %s124, [#allocation9], 128, 128, 8
    $region25: #{tpu_custom_call.1} parent=1 // pred_fallthru
      _
    // Predicated region
    $region26: #{tpu_custom_call.1} parent=1 // pred_check
      _
    $region27: #{tpu_custom_call.1} parent=1 // pred_check_branch
      %131 = sbr.rel (0) target = $region29
    $region28: #{tpu_custom_call.1} parent=1 // pred_region
      %133 = vsyncadd [#allocation9], 0
      %s134 = sshll.u32 [#allocation10], 4
      %s135 = int_to_ptr.vmem [resolvable:$true] %s134
      %s136 = sshll.u32 %s4, 4
      %s137 = int_to_ptr.hbm [resolvable:$true] %s136
      %142 = dma.vmem_to_hbm [thread:$0]  %s135, 256, %s137, [#allocation9], 128, 128, 8
    $region29: #{tpu_custom_call.1} parent=1 // pred_fallthru
      _
    // Predicated region
    $region30: #{tpu_custom_call.1} parent=1 // pred_check
      _
    $region31: #{tpu_custom_call.1} parent=1 // pred_check_branch
      %144 = sbr.rel (0) target = $region33
    $region32: #{tpu_custom_call.1} parent=1 // pred_region
      %146 = dma.done [#allocation4], 256
    $region33: #{tpu_custom_call.1} parent=1 // pred_fallthru
      _
    // Predicated region
    $region34: #{tpu_custom_call.1} parent=1 // pred_check
      _
    $region35: #{tpu_custom_call.1} parent=1 // pred_check_branch
      %148 = sbr.rel (0) target = $region37
    $region36: #{tpu_custom_call.1} parent=1 // pred_region
      %150 = dma.done [#allocation9], 256
    $region37: #{tpu_custom_call.1} parent=1 // pred_fallthru
      _
    // Predicated region
    $region38: #{tpu_custom_call.1} parent=1 // pred_check
      _
    $region39: #{tpu_custom_call.1} parent=1 // pred_check_branch
      %152 = sbr.rel (0) target = $region41
    $region40: #{tpu_custom_call.1} parent=1 // pred_region
      %154 = dma.done [#allocation9], 256
    $region41: #{tpu_custom_call.1} parent=1 // pred_fallthru
      _
    %155 = vsyncpa [#allocation3], 1
    %156 = vsyncpa [#allocation6], 1
    %157 = vsyncpa [#allocation4], 1
    %158 = vsyncpa [#allocation9], 1

</llo_original>
